<compile_context>
chip_gen: v5e
topology: v5e:2x2
jax: 0.10.0
libtpu: 0.0.40
codegen_flags: <defaults>
</compile_context>

<pallas_src>
import functools
import math

import jax
import jax.numpy as jnp
import numpy as np
from jax import lax
from jax.experimental import pallas as pl
from jax.experimental.pallas import tpu as pltpu


def mha_kernel(x_ref, mask_ref, wqkv_ref, bqkv_ref, wf_ref, bf_ref, o_ref,
               *, head, emb):
    """One batch element: fused-QKV, batched-head attention, output proj, GELU."""
    x = x_ref[0]                                   # (S, E) bf16
    HE = head * emb

    # --- fused QKV projection: one MXU matmul, f32 accumulation ---
    qkv = jnp.dot(x, wqkv_ref[...],
                  preferred_element_type=jnp.float32) + bqkv_ref[...]   # (S, 3*HE) f32
    qkv = qkv.astype(jnp.bfloat16)                 # bf16 operands for the attention matmuls

    def heads(base):                               # lane window -> (H, S, emb)
        return jnp.concatenate(
            [qkv[None, :, base + h * emb: base + (h + 1) * emb] for h in range(head)],
            axis=0)

    q3 = heads(0)            # (H, S, emb)
    k3 = heads(HE)
    v3 = heads(2 * HE)

    # --- batched scores over heads: contract emb, batch over H (no explicit .T) ---
    scores = lax.dot_general(
        q3, k3, (((2,), (2,)), ((0,), (0,))),
        preferred_element_type=jnp.float32) * jnp.float32(1.0 / math.sqrt(emb))  # (H,S,S)

    # Reference masking, hoisted: -1e9 where (row<col) | (user mask) | (score == 0).
    cond = (mask_ref[...] > 0.0)[None, :, :] | (scores == 0.0)
    masked = jnp.where(cond, jnp.float32(-1e9), scores)

    # --- softmax in f32; reciprocal goes to the EUP slot ---
    m = jnp.max(masked, axis=-1, keepdims=True)
    e = jnp.exp(masked - m)
    p = e * pl.reciprocal(jnp.sum(e, axis=-1, keepdims=True), approx=True)

    # --- P @ V, batched over heads: (H,S,S) x (H,S,emb) -> (H,S,emb) ---
    attn = lax.dot_general(
        p.astype(jnp.bfloat16), v3, (((2,), (1,)), ((0,), (0,))),
        preferred_element_type=jnp.float32)

    # --- output projection without concat/transpose: per-head matmul + head sum ---
    y_h = lax.dot_general(
        attn.astype(jnp.bfloat16), wf_ref[...], (((2,), (1,)), ((0,), (0,))),
        preferred_element_type=jnp.float32)        # (H, S, E_out)
    y = jnp.sum(y_h, axis=0) + bf_ref[...]         # (S, E_out)

    # exact (erf) GELU, matching nn.GELU()
    y = 0.5 * y * (1.0 + lax.erf(y * jnp.float32(1.0 / math.sqrt(2.0))))
    o_ref[0] = y.astype(o_ref.dtype)


def multihead_attention(x, mask_f, params, *, head, emb):
    B, S, E = x.shape
    HE = head * emb
    wq, bq, wk, bk, wv, bv, wf, bf = params

    # Fuse QKV weights/biases; pre-reshape output projection per head; cast to bf16
    # once in the wrapper (halves weight/activation DMA bytes).
    wqkv = jnp.concatenate([wq, wk, wv], axis=1).astype(jnp.bfloat16)   # (E, 3*HE)
    bqkv = jnp.concatenate([bq, bk, bv], axis=1)                        # (1, 3*HE) f32
    wf3 = wf.reshape(head, emb, E).astype(jnp.bfloat16)                 # (H, E, E)
    x_bf = x.astype(jnp.bfloat16)

    # Head-independent mask part: 1.0 where (upper triangle) or (user mask).
    row = lax.broadcasted_iota(jnp.int32, (S, S), 0)
    col = lax.broadcasted_iota(jnp.int32, (S, S), 1)
    static_mask = jnp.where((col > row) | (mask_f == 1.0),
                            jnp.float32(1.0), jnp.float32(0.0))

    kernel = functools.partial(mha_kernel, head=head, emb=emb)
    full2 = lambda b: (0, 0)
    full3 = lambda b: (0, 0, 0)

    return pl.pallas_call(
        kernel,
        out_shape=jax.ShapeDtypeStruct((B, S, E), jnp.float32),
        grid_spec=pltpu.PrefetchScalarGridSpec(
            num_scalar_prefetch=0,
            grid=(B,),
            in_specs=[
                pl.BlockSpec((1, S, E), lambda b: (b, 0, 0)),   # x (bf16)
                pl.BlockSpec((S, S), full2),                    # combined static mask
                pl.BlockSpec((E, 3 * HE), full2),               # W_qkv (bf16)
                pl.BlockSpec((1, 3 * HE), full2),               # b_qkv (f32)
                pl.BlockSpec((head, emb, E), full3),            # W_f per head (bf16)
                pl.BlockSpec((1, E), full2),                    # b_f (f32)
            ],
            out_specs=pl.BlockSpec((1, S, E), lambda b: (b, 0, 0)),
        ),
        compiler_params=pltpu.CompilerParams(
            dimension_semantics=("parallel",)),
    )(x_bf, static_mask, wqkv, bqkv, wf3, bf)


def ref_forward(x, mask_f, params, *, head, emb):
    """Plain-JAX f32 reference replicating the PyTorch forward (masked path)."""
    wq, bq, wk, bk, wv, bv, wf, bf = params
    B, S, E = x.shape
    q = x @ wq + bq
    k = x @ wk + bk
    v = x @ wv + bv
    split = lambda t: t.reshape(B, S, head, emb).transpose(0, 2, 1, 3)
    q, k, v = split(q), split(k), split(v)                     # (B,H,S,E)
    scores = jnp.einsum("bhse,bhte->bhst", q, k) / math.sqrt(emb)
    row = lax.broadcasted_iota(jnp.int32, (S, S), 0)
    col = lax.broadcasted_iota(jnp.int32, (S, S), 1)
    tri = jnp.where(row >= col, scores, 0.0)
    m1 = jnp.where(mask_f[None, None] == 1.0, -1e9, scores)
    m2 = jnp.where(tri == 0.0, -1e9, m1)
    p = jax.nn.softmax(m2, axis=-1)
    a = jnp.einsum("bhst,bhte->bhse", p, v)
    a = a.transpose(0, 2, 1, 3).reshape(B, S, head * emb)
    y = a @ wf + bf
    return 0.5 * y * (1.0 + lax.erf(y / math.sqrt(2.0)))


def init_params(key, head, emb):
    """Deterministic init mirroring nn.Linear's U(-1/sqrt(fan_in), +1/sqrt(fan_in))."""
    HE = head * emb
    ks = jax.random.split(key, 8)

    def lin(kw, kb, fan_in, fan_out):
        bound = 1.0 / math.sqrt(fan_in)
        w = jax.random.uniform(kw, (fan_in, fan_out), jnp.float32, -bound, bound)
        b = jax.random.uniform(kb, (1, fan_out), jnp.float32, -bound, bound)
        return w, b

    wq, bq = lin(ks[0], ks[1], emb, HE)
    wk, bk = lin(ks[2], ks[3], emb, HE)
    wv, bv = lin(ks[4], ks[5], emb, HE)
    wf, bf = lin(ks[6], ks[7], HE, emb)
    return (wq, bq, wk, bk, wv, bv, wf, bf)


if __name__ == "__main__":
    B, S, E, H = 2, 8, 32, 4          # batch, seq, embedding_size, head_size

    key = jax.random.PRNGKey(0)
    kx, kp = jax.random.split(key)
    x = jax.random.normal(kx, (B, S, E), jnp.float32)
    params = init_params(kp, H, E)

    # user mask: mask out (1.0 == True) the last two key positions for every query
    col = lax.broadcasted_iota(jnp.int32, (S, S), 1)
    mask_f = (col >= S - 2).astype(jnp.float32)

    out = multihead_attention(x, mask_f, params, head=H, emb=E)
    out = jax.block_until_ready(out)

    # f32 reference; tolerance loosened because kernel matmuls run in bf16
    # (f32 accumulation).
    ref = ref_forward(x, mask_f, params, head=H, emb=E)
    np.testing.assert_allclose(np.asarray(out), np.asarray(ref),
                               rtol=5e-2, atol=5e-2)

    print("KERNEL_OK")
</pallas_src>

<mosaic_0001>
module attributes {stable_mosaic.version = 11 : i64} {
  func.func @mha_kernel(%arg0: i32, %arg1: memref<1x8x32xbf16, #tpu.memory_space<vmem>>, %arg2: memref<8x8xf32, #tpu.memory_space<vmem>>, %arg3: memref<32x384xbf16, #tpu.memory_space<vmem>>, %arg4: memref<1x384xf32, #tpu.memory_space<vmem>>, %arg5: memref<4x32x32xbf16, #tpu.memory_space<vmem>>, %arg6: memref<1x32xf32, #tpu.memory_space<vmem>>, %arg7: memref<1x8x32xf32, #tpu.memory_space<vmem>>) attributes {dimension_semantics = [#tpu.dimension_semantics<parallel>], iteration_bounds = array<i64: 2>, scalar_prefetch = 0 : i64, scratch_operands = 0 : i64, tpu.core_type = #tpu.core_type<tc>, window_params = [{transform_indices = @transform_0, window_bounds = array<i64: 1, 8, 32>}, {pipeline_mode = #tpu.pipeline_mode<synchronous>, transform_indices = @transform_1, window_bounds = array<i64: 8, 8>}, {pipeline_mode = #tpu.pipeline_mode<synchronous>, transform_indices = @transform_2, window_bounds = array<i64: 32, 384>}, {pipeline_mode = #tpu.pipeline_mode<synchronous>, transform_indices = @transform_3, window_bounds = array<i64: 1, 384>}, {pipeline_mode = #tpu.pipeline_mode<synchronous>, transform_indices = @transform_4, window_bounds = array<i64: 4, 32, 32>}, {pipeline_mode = #tpu.pipeline_mode<synchronous>, transform_indices = @transform_5, window_bounds = array<i64: 1, 32>}, {transform_indices = @transform_6, window_bounds = array<i64: 1, 8, 32>}]} {
    %c0 = arith.constant 0 : index
    %c0_0 = arith.constant 0 : index
    %c0_1 = arith.constant 0 : index
    %0 = vector.load %arg1[%c0, %c0_0, %c0_1] : memref<1x8x32xbf16, #tpu.memory_space<vmem>>, vector<1x8x32xbf16>
    %1 = vector.shape_cast %0 : vector<1x8x32xbf16> to vector<8x32xbf16>
    %c0_2 = arith.constant 0 : index
    %c0_3 = arith.constant 0 : index
    %2 = vector.load %arg3[%c0_2, %c0_3] : memref<32x384xbf16, #tpu.memory_space<vmem>>, vector<32x384xbf16>
    %cst = arith.constant dense<0.000000e+00> : vector<8x384xf32>
    %3 = tpu.matmul %1, %2, %cst {dimension_numbers = #tpu.dot_dimension_numbers<[1], [0], [0], [1], [0, 0, 1, 1], [], []>} : vector<8x32xbf16>, vector<32x384xbf16>, vector<8x384xf32> -> vector<8x384xf32>
    %c0_4 = arith.constant 0 : index
    %c0_5 = arith.constant 0 : index
    %4 = vector.load %arg4[%c0_4, %c0_5] : memref<1x384xf32, #tpu.memory_space<vmem>>, vector<1x384xf32>
    %5 = vector.broadcast %4 : vector<1x384xf32> to vector<8x384xf32>
    %6 = arith.addf %3, %5 : vector<8x384xf32>
    %7 = arith.truncf %6 : vector<8x384xf32> to vector<8x384xbf16>
    %8 = vector.extract_strided_slice %7 {offsets = [0, 0], sizes = [8, 32], strides = [1, 1]} : vector<8x384xbf16> to vector<8x32xbf16>
    %9 = vector.shape_cast %8 : vector<8x32xbf16> to vector<1x8x32xbf16>
    %10 = vector.extract_strided_slice %7 {offsets = [0, 32], sizes = [8, 32], strides = [1, 1]} : vector<8x384xbf16> to vector<8x32xbf16>
    %11 = vector.shape_cast %10 : vector<8x32xbf16> to vector<1x8x32xbf16>
    %12 = vector.extract_strided_slice %7 {offsets = [0, 64], sizes = [8, 32], strides = [1, 1]} : vector<8x384xbf16> to vector<8x32xbf16>
    %13 = vector.shape_cast %12 : vector<8x32xbf16> to vector<1x8x32xbf16>
    %14 = vector.extract_strided_slice %7 {offsets = [0, 96], sizes = [8, 32], strides = [1, 1]} : vector<8x384xbf16> to vector<8x32xbf16>
    %15 = vector.shape_cast %14 : vector<8x32xbf16> to vector<1x8x32xbf16>
    %16 = tpu.concatenate %9, %11, %13, %15 in 0 : vector<1x8x32xbf16>, vector<1x8x32xbf16>, vector<1x8x32xbf16>, vector<1x8x32xbf16> -> vector<4x8x32xbf16>
    %17 = vector.extract_strided_slice %7 {offsets = [0, 128], sizes = [8, 32], strides = [1, 1]} : vector<8x384xbf16> to vector<8x32xbf16>
    %18 = vector.shape_cast %17 : vector<8x32xbf16> to vector<1x8x32xbf16>
    %19 = vector.extract_strided_slice %7 {offsets = [0, 160], sizes = [8, 32], strides = [1, 1]} : vector<8x384xbf16> to vector<8x32xbf16>
    %20 = vector.shape_cast %19 : vector<8x32xbf16> to vector<1x8x32xbf16>
    %21 = vector.extract_strided_slice %7 {offsets = [0, 192], sizes = [8, 32], strides = [1, 1]} : vector<8x384xbf16> to vector<8x32xbf16>
    %22 = vector.shape_cast %21 : vector<8x32xbf16> to vector<1x8x32xbf16>
    %23 = vector.extract_strided_slice %7 {offsets = [0, 224], sizes = [8, 32], strides = [1, 1]} : vector<8x384xbf16> to vector<8x32xbf16>
    %24 = vector.shape_cast %23 : vector<8x32xbf16> to vector<1x8x32xbf16>
    %25 = tpu.concatenate %18, %20, %22, %24 in 0 : vector<1x8x32xbf16>, vector<1x8x32xbf16>, vector<1x8x32xbf16>, vector<1x8x32xbf16> -> vector<4x8x32xbf16>
    %26 = vector.extract_strided_slice %7 {offsets = [0, 256], sizes = [8, 32], strides = [1, 1]} : vector<8x384xbf16> to vector<8x32xbf16>
    %27 = vector.shape_cast %26 : vector<8x32xbf16> to vector<1x8x32xbf16>
    %28 = vector.extract_strided_slice %7 {offsets = [0, 288], sizes = [8, 32], strides = [1, 1]} : vector<8x384xbf16> to vector<8x32xbf16>
    %29 = vector.shape_cast %28 : vector<8x32xbf16> to vector<1x8x32xbf16>
    %30 = vector.extract_strided_slice %7 {offsets = [0, 320], sizes = [8, 32], strides = [1, 1]} : vector<8x384xbf16> to vector<8x32xbf16>
    %31 = vector.shape_cast %30 : vector<8x32xbf16> to vector<1x8x32xbf16>
    %32 = vector.extract_strided_slice %7 {offsets = [0, 352], sizes = [8, 32], strides = [1, 1]} : vector<8x384xbf16> to vector<8x32xbf16>
    %33 = vector.shape_cast %32 : vector<8x32xbf16> to vector<1x8x32xbf16>
    %34 = tpu.concatenate %27, %29, %31, %33 in 0 : vector<1x8x32xbf16>, vector<1x8x32xbf16>, vector<1x8x32xbf16>, vector<1x8x32xbf16> -> vector<4x8x32xbf16>
    %cst_6 = arith.constant dense<0.000000e+00> : vector<4x8x8xf32>
    %35 = tpu.matmul %16, %25, %cst_6 {dimension_numbers = #tpu.dot_dimension_numbers<[2], [2], [1], [1], [0, 0, 0, 1, 1, 1], [0], [0]>} : vector<4x8x32xbf16>, vector<4x8x32xbf16>, vector<4x8x8xf32> -> vector<4x8x8xf32>
    %cst_7 = arith.constant 0.176776692 : f32
    %36 = vector.broadcast %cst_7 : f32 to vector<4x8x8xf32>
    %37 = arith.mulf %35, %36 : vector<4x8x8xf32>
    %c0_8 = arith.constant 0 : index
    %c0_9 = arith.constant 0 : index
    %38 = vector.load %arg2[%c0_8, %c0_9] : memref<8x8xf32, #tpu.memory_space<vmem>>, vector<8x8xf32>
    %cst_10 = arith.constant 0.000000e+00 : f32
    %39 = vector.broadcast %cst_10 : f32 to vector<8x8xf32>
    %40 = arith.cmpf ogt, %38, %39 : vector<8x8xf32>
    %41 = vector.shape_cast %40 : vector<8x8xi1> to vector<1x8x8xi1>
    %cst_11 = arith.constant 0.000000e+00 : f32
    %42 = vector.broadcast %cst_11 : f32 to vector<4x8x8xf32>
    %43 = arith.cmpf oeq, %37, %42 : vector<4x8x8xf32>
    %44 = vector.broadcast %41 : vector<1x8x8xi1> to vector<4x8x8xi1>
    %45 = arith.ori %44, %43 : vector<4x8x8xi1>
    %cst_12 = arith.constant -1.000000e+09 : f32
    %46 = vector.broadcast %cst_12 : f32 to vector<4x8x8xf32>
    %47 = arith.select %45, %46, %37 : vector<4x8x8xi1>, vector<4x8x8xf32>
    %cst_13 = arith.constant dense<0xFF800000> : vector<4x8xf32>
    %48 = vector.multi_reduction <maximumf>, %47, %cst_13 [2] : vector<4x8x8xf32> to vector<4x8xf32>
    %49 = vector.shape_cast %48 : vector<4x8xf32> to vector<4x8x1xf32>
    %50 = vector.broadcast %49 : vector<4x8x1xf32> to vector<4x8x8xf32>
    %51 = arith.subf %47, %50 : vector<4x8x8xf32>
    %52 = math.exp %51 : vector<4x8x8xf32>
    %cst_14 = arith.constant dense<0.000000e+00> : vector<4x8xf32>
    %53 = vector.multi_reduction <add>, %52, %cst_14 [2] : vector<4x8x8xf32> to vector<4x8xf32>
    %54 = vector.shape_cast %53 : vector<4x8xf32> to vector<4x8x1xf32>
    %55 = tpu.reciprocal %54 {approx = true} : vector<4x8x1xf32> -> vector<4x8x1xf32>
    %56 = vector.broadcast %55 : vector<4x8x1xf32> to vector<4x8x8xf32>
    %57 = arith.mulf %52, %56 : vector<4x8x8xf32>
    %58 = arith.truncf %57 : vector<4x8x8xf32> to vector<4x8x8xbf16>
    %cst_15 = arith.constant dense<0.000000e+00> : vector<4x8x32xf32>
    %59 = tpu.matmul %58, %34, %cst_15 {dimension_numbers = #tpu.dot_dimension_numbers<[2], [1], [1], [2], [0, 0, 0, 1, 1, 2], [0], [0]>} : vector<4x8x8xbf16>, vector<4x8x32xbf16>, vector<4x8x32xf32> -> vector<4x8x32xf32>
    %60 = arith.truncf %59 : vector<4x8x32xf32> to vector<4x8x32xbf16>
    %c0_16 = arith.constant 0 : index
    %c0_17 = arith.constant 0 : index
    %c0_18 = arith.constant 0 : index
    %61 = vector.load %arg5[%c0_16, %c0_17, %c0_18] : memref<4x32x32xbf16, #tpu.memory_space<vmem>>, vector<4x32x32xbf16>
    %cst_19 = arith.constant dense<0.000000e+00> : vector<4x8x32xf32>
    %62 = tpu.matmul %60, %61, %cst_19 {dimension_numbers = #tpu.dot_dimension_numbers<[2], [1], [1], [2], [0, 0, 0, 1, 1, 2], [0], [0]>} : vector<4x8x32xbf16>, vector<4x32x32xbf16>, vector<4x8x32xf32> -> vector<4x8x32xf32>
    %cst_20 = arith.constant dense<0.000000e+00> : vector<8x32xf32>
    %63 = vector.multi_reduction <add>, %62, %cst_20 [0] : vector<4x8x32xf32> to vector<8x32xf32>
    %c0_21 = arith.constant 0 : index
    %c0_22 = arith.constant 0 : index
    %64 = vector.load %arg6[%c0_21, %c0_22] : memref<1x32xf32, #tpu.memory_space<vmem>>, vector<1x32xf32>
    %65 = vector.broadcast %64 : vector<1x32xf32> to vector<8x32xf32>
    %66 = arith.addf %63, %65 : vector<8x32xf32>
    %cst_23 = arith.constant 5.000000e-01 : f32
    %67 = vector.broadcast %cst_23 : f32 to vector<8x32xf32>
    %68 = arith.mulf %67, %66 : vector<8x32xf32>
    %cst_24 = arith.constant 0.707106769 : f32
    %69 = vector.broadcast %cst_24 : f32 to vector<8x32xf32>
    %70 = arith.mulf %66, %69 : vector<8x32xf32>
    %71 = math.erf %70 : vector<8x32xf32>
    %cst_25 = arith.constant 1.000000e+00 : f32
    %72 = vector.broadcast %cst_25 : f32 to vector<8x32xf32>
    %73 = arith.addf %72, %71 : vector<8x32xf32>
    %74 = arith.mulf %68, %73 : vector<8x32xf32>
    %c0_26 = arith.constant 0 : index
    %c0_27 = arith.constant 0 : index
    %c0_28 = arith.constant 0 : index
    %75 = vector.load %arg7[%c0_26, %c0_27, %c0_28] : memref<1x8x32xf32, #tpu.memory_space<vmem>>, vector<1x8x32xf32>
    %76 = vector.shape_cast %75 : vector<1x8x32xf32> to vector<8x32xf32>
    %77 = vector.shape_cast %74 : vector<8x32xf32> to vector<1x8x32xf32>
    tpu.vector_store %arg7[%c0_26, %c0_27, %c0_28], %77 {strides = array<i32>} : memref<1x8x32xf32, #tpu.memory_space<vmem>>, vector<1x8x32xf32>,
    return
  }
  func.func @transform_0(%arg0: i32) -> (i32, i32, i32) {
    %c0_i32 = arith.constant 0 : i32
    %c0_i32_0 = arith.constant 0 : i32
    %c0_i32_1 = arith.constant 0 : i32
    return %arg0, %c0_i32, %c0_i32_0 : i32, i32, i32
  }
  func.func @transform_1(%arg0: i32) -> (i32, i32) {
    %c0_i32 = arith.constant 0 : i32
    %c0_i32_0 = arith.constant 0 : i32
    %c0_i32_1 = arith.constant 0 : i32
    return %c0_i32, %c0_i32_0 : i32, i32
  }
  func.func @transform_2(%arg0: i32) -> (i32, i32) {
    %c0_i32 = arith.constant 0 : i32
    %c0_i32_0 = arith.constant 0 : i32
    %c0_i32_1 = arith.constant 0 : i32
    return %c0_i32, %c0_i32_0 : i32, i32
  }
  func.func @transform_3(%arg0: i32) -> (i32, i32) {
    %c0_i32 = arith.constant 0 : i32
    %c0_i32_0 = arith.constant 0 : i32
    %c0_i32_1 = arith.constant 0 : i32
    return %c0_i32, %c0_i32_0 : i32, i32
  }
  func.func @transform_4(%arg0: i32) -> (i32, i32, i32) {
    %c0_i32 = arith.constant 0 : i32
    %c0_i32_0 = arith.constant 0 : i32
    %c0_i32_1 = arith.constant 0 : i32
    %c0_i32_2 = arith.constant 0 : i32
    return %c0_i32, %c0_i32_0, %c0_i32_1 : i32, i32, i32
  }
  func.func @transform_5(%arg0: i32) -> (i32, i32) {
    %c0_i32 = arith.constant 0 : i32
    %c0_i32_0 = arith.constant 0 : i32
    %c0_i32_1 = arith.constant 0 : i32
    return %c0_i32, %c0_i32_0 : i32, i32
  }
  func.func @transform_6(%arg0: i32) -> (i32, i32, i32) {
    %c0_i32 = arith.constant 0 : i32
    %c0_i32_0 = arith.constant 0 : i32
    %c0_i32_1 = arith.constant 0 : i32
    return %arg0, %c0_i32, %c0_i32_0 : i32, i32, i32
  }
}

</mosaic_0001>

<llo_original>
// kernel: tpu_custom_call.1
$region0: #{tpu_custom_call.1}
  #allocation0 [shape = 'u32[]', space=smem, size = 0x4, offset = 0x4, fixed_abs, tag = 'smem constant byte address 0x4 - core index']
  #allocation1 [shape = 'u32[72,128]{1,0:T(1,128)}', space=vmem, size = 0x9000, scoped, tag = 'internal scratch']
  %s0 = inlined_call_operand.hbm [shape: bf16[2,8,32], index: 0, kind: input, shape index: {}]
  %s1 = inlined_call_operand.hbm [shape: f32[8,8], index: 1, kind: input, shape index: {}]
  %s2 = inlined_call_operand.hbm [shape: bf16[32,384], index: 2, kind: input, shape index: {}]
  %s3 = inlined_call_operand.hbm [shape: f32[1,384], index: 3, kind: input, shape index: {}]
  %s4 = inlined_call_operand.hbm [shape: bf16[4,32,32], index: 4, kind: input, shape index: {}]
  %s5 = inlined_call_operand.vmem [shape: f32[1,32], index: 5, kind: input, shape index: {}]
  %s6 = inlined_call_operand.hbm [shape: f32[2,8,32], index: 6, kind: output, shape index: {}]
  %s7 = sld [smem:[#allocation0]]
  $region77: #{tpu_custom_call.1} parent=0
    _
  %s9 = ssub.s32 1, %s7
  %s10 = scalar_select 0, %s9, %s7
  $region1: #{tpu_custom_call.1} parent=0
    #allocation2 [shape = 'u8[4096]{0}', space=vmem, size = 0x1000, scoped, tag = 'input window, operand 0']
    #allocation3 [shape = 's32[2]{0}', space=sflag, size = 0x8, scoped, tag = 'scoped memory for tpu_custom_call.1']
    #allocation4 [shape = 's32[2]{0}', space=sflag, size = 0x8, scoped, tag = 'scoped memory for tpu_custom_call.1']
    #allocation5 [shape = 'u8[4096]{0}', space=vmem, size = 0x1000, scoped, tag = 'input window, operand 1, single buffered']
    #allocation6 [shape = 's32[1]{0}', space=sflag, size = 0x4, scoped, tag = 'scoped memory for tpu_custom_call.1']
    #allocation7 [shape = 'u8[24576]{0}', space=vmem, size = 0x6000, scoped, tag = 'input window, operand 2, single buffered']
    #allocation8 [shape = 'u8[1536]{0}', space=vmem, size = 0x800, scoped, tag = 'input window, operand 3, single buffered']
    #allocation9 [shape = 's32[1]{0}', space=sflag, size = 0x4, scoped, tag = 'scoped memory for tpu_custom_call.1']
    #allocation10 [shape = 'u8[32768]{0}', space=vmem, size = 0x8000, scoped, tag = 'input window, operand 4, single buffered']
    #allocation11 [shape = 'u8[8192]{0}', space=vmem, size = 0x2000, scoped, tag = 'output window, operand 0']
    %11 = vsyncpa [#allocation3], 0
    %s12 = scalar_lea.sflag [#allocation3], 1
    %13 = vsyncpa %s12, 0
    %14 = vsyncpa [#allocation6], 0
    %15 = vsyncpa [#allocation9], 0
    %16 = vsyncpa [#allocation4], 0
    %s17 = scalar_lea.sflag [#allocation4], 1
    %18 = vsyncpa %s17, 0
    loop: start=0, step=1, limit=4
    $region2: #{tpu_custom_call.1} parent=1 // loop_pre_header
      _
    $region3: #{tpu_custom_call.1} parent=1 // loop_header
      %s20 = sphi 0, %s24
      %p21 = scmp.ge.s32.totalorder %s20, 4
      %s30 = sphi 0, %s32
      %s33 = sphi 0, %s30
      %s34 = sphi 0, %s33
      %s50 = sphi 0, %s34
      %s54 = sphi 0, %s54
      %s56 = sphi 0, %s54
      %s57 = sphi 0, %s56
      %s71 = sphi 0, %s57
      %s75 = sphi 0, %s75
      %s77 = sphi 0, %s75
      %s78 = sphi 0, %s77
      %s92 = sphi 0, %s78
      %s96 = sphi 0, %s96
      %s98 = sphi 0, %s96
      %s99 = sphi 0, %s98
      %s113 = sphi 0, %s99
      %s117 = sphi 0, %s117
      %s119 = sphi 0, %s117
      %s120 = sphi 0, %s119
      %s134 = sphi 0, %s120
      %s138 = sphi 0, %s138
      %s140 = sphi 0, %s138
      %s141 = sphi 0, %s140
      %s155 = sphi 0, %s141
      %s161 = sphi 0, %s163
      %s164 = sphi 0, %s161
      %s165 = sphi 0, %s164
      %s181 = sphi 0, %s165
    $region4: #{tpu_custom_call.1} parent=1 // loop_header_branch
      %23 = sbr.rel (%p21) target = $region8
    $region5: #{tpu_custom_call.1} parent=1 // loop_body
      %s25 = ssub.s32 %s20, 1
      %s26 = ssub.s32 %s20, 2
      %s27 = sadd.s32 %s20, 1
      %s28 = ssub.s32 %s20, %s27
      %p29 = scmp.eq.s32.totalorder %s28, 0
      %s31 = sadd.s32 %s30, 1
      %s32 = scalar_select %p29, %s30, %s31
      %p35 = pneg %p29
      %p36 = scmp.eq.s32.totalorder %s20, 1
      %p37 = por %p35, %p36
      %p38 = scmp.ne.s32.totalorder %s30, %s33
      %p39 = scmp.eq.s32.totalorder %s20, 0
      %p40 = por %p38, %p39
      %p41 = scmp.ne.s32.totalorder %s30, %s33
      %p42 = scmp.eq.s32.totalorder %s25, 1
      %p43 = por %p41, %p42
      %p44 = scmp.ne.s32.totalorder %s33, %s34
      %p45 = scmp.eq.s32.totalorder %s25, 0
      %p46 = por %p44, %p45
      %p47 = scmp.ne.s32.totalorder %s33, %s34
      %p48 = scmp.eq.s32.totalorder %s26, 1
      %p49 = por %p47, %p48
      %p51 = scmp.ne.s32.totalorder %s34, %s50
      %p52 = scmp.eq.s32.totalorder %s26, 0
      %p53 = por %p51, %p52
      %s55 = sadd.s32 %s54, 1
      %p58 = scmp.eq.s32.totalorder %s20, 1
      %p59 = scmp.ne.s32.totalorder %s54, %s56
      %p60 = scmp.eq.s32.totalorder %s20, 0
      %p61 = por %p59, %p60
      %p62 = scmp.ne.s32.totalorder %s54, %s56
      %p63 = scmp.eq.s32.totalorder %s25, 1
      %p64 = por %p62, %p63
      %p65 = scmp.ne.s32.totalorder %s56, %s57
      %p66 = scmp.eq.s32.totalorder %s25, 0
      %p67 = por %p65, %p66
      %p68 = scmp.ne.s32.totalorder %s56, %s57
      %p69 = scmp.eq.s32.totalorder %s26, 1
      %p70 = por %p68, %p69
      %p72 = scmp.ne.s32.totalorder %s57, %s71
      %p73 = scmp.eq.s32.totalorder %s26, 0
      %p74 = por %p72, %p73
      %s76 = sadd.s32 %s75, 1
      %p79 = scmp.eq.s32.totalorder %s20, 1
      %p80 = scmp.ne.s32.totalorder %s75, %s77
      %p81 = scmp.eq.s32.totalorder %s20, 0
      %p82 = por %p80, %p81
      %p83 = scmp.ne.s32.totalorder %s75, %s77
      %p84 = scmp.eq.s32.totalorder %s25, 1
      %p85 = por %p83, %p84
      %p86 = scmp.ne.s32.totalorder %s77, %s78
      %p87 = scmp.eq.s32.totalorder %s25, 0
      %p88 = por %p86, %p87
      %p89 = scmp.ne.s32.totalorder %s77, %s78
      %p90 = scmp.eq.s32.totalorder %s26, 1
      %p91 = por %p89, %p90
      %p93 = scmp.ne.s32.totalorder %s78, %s92
      %p94 = scmp.eq.s32.totalorder %s26, 0
      %p95 = por %p93, %p94
      %s97 = sadd.s32 %s96, 1
      %p100 = scmp.eq.s32.totalorder %s20, 1
      %p101 = scmp.ne.s32.totalorder %s96, %s98
      %p102 = scmp.eq.s32.totalorder %s20, 0
      %p103 = por %p101, %p102
      %p104 = scmp.ne.s32.totalorder %s96, %s98
      %p105 = scmp.eq.s32.totalorder %s25, 1
      %p106 = por %p104, %p105
      %p107 = scmp.ne.s32.totalorder %s98, %s99
      %p108 = scmp.eq.s32.totalorder %s25, 0
      %p109 = por %p107, %p108
      %p110 = scmp.ne.s32.totalorder %s98, %s99
      %p111 = scmp.eq.s32.totalorder %s26, 1
      %p112 = por %p110, %p111
      %p114 = scmp.ne.s32.totalorder %s99, %s113
      %p115 = scmp.eq.s32.totalorder %s26, 0
      %p116 = por %p114, %p115
      %s118 = sadd.s32 %s117, 1
      %p121 = scmp.eq.s32.totalorder %s20, 1
      %p122 = scmp.ne.s32.totalorder %s117, %s119
      %p123 = scmp.eq.s32.totalorder %s20, 0
      %p124 = por %p122, %p123
      %p125 = scmp.ne.s32.totalorder %s117, %s119
      %p126 = scmp.eq.s32.totalorder %s25, 1
      %p127 = por %p125, %p126
      %p128 = scmp.ne.s32.totalorder %s119, %s120
      %p129 = scmp.eq.s32.totalorder %s25, 0
      %p130 = por %p128, %p129
      %p131 = scmp.ne.s32.totalorder %s119, %s120
      %p132 = scmp.eq.s32.totalorder %s26, 1
      %p133 = por %p131, %p132
      %p135 = scmp.ne.s32.totalorder %s120, %s134
      %p136 = scmp.eq.s32.totalorder %s26, 0
      %p137 = por %p135, %p136
      %s139 = sadd.s32 %s138, 1
      %p142 = scmp.eq.s32.totalorder %s20, 1
      %p143 = scmp.ne.s32.totalorder %s138, %s140
      %p144 = scmp.eq.s32.totalorder %s20, 0
      %p145 = por %p143, %p144
      %p146 = scmp.ne.s32.totalorder %s138, %s140
      %p147 = scmp.eq.s32.totalorder %s25, 1
      %p148 = por %p146, %p147
      %p149 = scmp.ne.s32.totalorder %s140, %s141
      %p150 = scmp.eq.s32.totalorder %s25, 0
      %p151 = por %p149, %p150
      %p152 = scmp.ne.s32.totalorder %s140, %s141
      %p153 = scmp.eq.s32.totalorder %s26, 1
      %p154 = por %p152, %p153
      %p156 = scmp.ne.s32.totalorder %s141, %s155
      %p157 = scmp.eq.s32.totalorder %s26, 0
      %p158 = por %p156, %p157
      %s159 = ssub.s32 %s20, %s27
      %p160 = scmp.eq.s32.totalorder %s159, 0
      %s162 = sadd.s32 %s161, 1
      %s163 = scalar_select %p160, %s161, %s162
      %p166 = pneg %p160
      %p167 = scmp.eq.s32.totalorder %s20, 1
      %p168 = por %p166, %p167
      %p169 = scmp.ne.s32.totalorder %s161, %s164
      %p170 = scmp.eq.s32.totalorder %s20, 0
      %p171 = por %p169, %p170
      %p172 = scmp.ne.s32.totalorder %s161, %s164
      %p173 = scmp.eq.s32.totalorder %s25, 1
      %p174 = por %p172, %p173
      %p175 = scmp.ne.s32.totalorder %s164, %s165
      %p176 = scmp.eq.s32.totalorder %s25, 0
      %p177 = por %p175, %p176
      %p178 = scmp.ne.s32.totalorder %s164, %s165
      %p179 = scmp.eq.s32.totalorder %s26, 1
      %p180 = por %p178, %p179
      %p182 = scmp.ne.s32.totalorder %s165, %s181
      %p183 = scmp.eq.s32.totalorder %s26, 0
      %p184 = por %p182, %p183
      %p185 = scmp.le.s32.totalorder 1, %s20
      %p186 = scmp.lt.s32.totalorder %s20, 3
      %p187 = pnand %p185, %p186
      %p188 = pneg %p187
      // Predicated region
      $region9: #{tpu_custom_call.1} parent=5 // pred_check
        _
      $region10: #{tpu_custom_call.1} parent=5 // pred_check_branch
        %190 = sbr.rel (%p187) target = $region12
      $region11: #{tpu_custom_call.1} parent=5 // pred_region
        %s191 = ssub.s32 %s20, 1
        // Predicated region
        $region13: #{tpu_custom_call.1} parent=11 // pred_check
          %p192 = pneg %p67
        $region14: #{tpu_custom_call.1} parent=11 // pred_check_branch
          %194 = sbr.rel (%p192) target = $region16
        $region15: #{tpu_custom_call.1} parent=11 // pred_region
          %196 = vsyncadd [#allocation6], 0
          %s198 = sshll.u32 %s1, 4
          %s199 = int_to_ptr.hbm [resolvable:$true] %s198
          %s200 = sshll.u32 [#allocation5], 4
          %s201 = int_to_ptr.vmem [resolvable:$true] %s200
          %203 = dma.hbm_to_vmem [thread:$0]  %s199, 128, %s201, [#allocation6]
        $region16: #{tpu_custom_call.1} parent=11 // pred_fallthru
          _
        // Predicated region
        $region17: #{tpu_custom_call.1} parent=11 // pred_check
          %p204 = pneg %p88
        $region18: #{tpu_custom_call.1} parent=11 // pred_check_branch
          %206 = sbr.rel (%p204) target = $region20
        $region19: #{tpu_custom_call.1} parent=11 // pred_region
          %208 = vsyncadd [#allocation6], 0
          %s209 = sshll.u32 %s2, 4
          %s210 = int_to_ptr.hbm [resolvable:$true] %s209
          %s211 = sshll.u32 [#allocation7], 4
          %s212 = int_to_ptr.vmem [resolvable:$true] %s211
          %217 = dma.hbm_to_vmem [thread:$0]  %s210, 768, %s212, [#allocation6], 192, 192, 12
        $region20: #{tpu_custom_call.1} parent=11 // pred_fallthru
          _
        // Predicated region
        $region21: #{tpu_custom_call.1} parent=11 // pred_check
          %p218 = pneg %p109
        $region22: #{tpu_custom_call.1} parent=11 // pred_check_branch
          %220 = sbr.rel (%p218) target = $region24
        $region23: #{tpu_custom_call.1} parent=11 // pred_region
          %222 = vsyncadd [#allocation9], 0
          %s224 = sshll.u32 %s3, 4
          %s225 = int_to_ptr.hbm [resolvable:$true] %s224
          %s226 = sshll.u32 [#allocation8], 4
          %s227 = int_to_ptr.vmem [resolvable:$true] %s226
          %229 = dma.hbm_to_vmem [thread:$0]  %s225, 48, %s227, [#allocation9]
        $region24: #{tpu_custom_call.1} parent=11 // pred_fallthru
          _
        // Predicated region
        $region25: #{tpu_custom_call.1} parent=11 // pred_check
          %p230 = pneg %p130
        $region26: #{tpu_custom_call.1} parent=11 // pred_check_branch
          %232 = sbr.rel (%p230) target = $region28
        $region27: #{tpu_custom_call.1} parent=11 // pred_region
          %234 = vsyncadd [#allocation9], 0
          %s235 = sshll.u32 %s4, 4
          %s236 = int_to_ptr.hbm [resolvable:$true] %s235
          %s237 = sshll.u32 [#allocation10], 4
          %s238 = int_to_ptr.vmem [resolvable:$true] %s237
          %243 = dma.hbm_to_vmem [thread:$0]  %s236, 1024, %s238, [#allocation9], 64, 64, 4
        $region28: #{tpu_custom_call.1} parent=11 // pred_fallthru
          _
        // Predicated region
        $region29: #{tpu_custom_call.1} parent=11 // pred_check
          %p244 = pneg %p151
        $region30: #{tpu_custom_call.1} parent=11 // pred_check_branch
          %246 = sbr.rel (%p244) target = $region32
        $region31: #{tpu_custom_call.1} parent=11 // pred_region
          _
        $region32: #{tpu_custom_call.1} parent=11 // pred_fallthru
          _
      $region12: #{tpu_custom_call.1} parent=5 // pred_fallthru
        _
      %p247 = scmp.lt.s32.totalorder %s20, 2
      // Predicated region
      $region33: #{tpu_custom_call.1} parent=5 // pred_check
        %p248 = pneg %p247
      $region34: #{tpu_custom_call.1} parent=5 // pred_check_branch
        %250 = sbr.rel (%p248) target = $region36
      $region35: #{tpu_custom_call.1} parent=5 // pred_region
        // Predicated region
        $region37: #{tpu_custom_call.1} parent=35 // pred_check
          %p251 = pneg %p40
        $region38: #{tpu_custom_call.1} parent=35 // pred_check_branch
          %253 = sbr.rel (%p251) target = $region40
        $region39: #{tpu_custom_call.1} parent=35 // pred_region
          %s254 = sand.u32 %s30, 1
          %s255 = scalar_lea.sflag [#allocation3], %s254
          %s256 = sand.u32 %s30, 1
          %s257 = smul.addr %s256, 4
          %s258 = scalar_lea.vmem [#allocation2], %s257
          %260 = vsyncadd %s255, 0
          %s261 = smul.addr %s20, 4
          %s262 = scalar_lea.hbm %s0, %s261
          %s264 = sshll.u32 %s262, 4
          %s265 = int_to_ptr.hbm [resolvable:$true] %s264
          %s266 = sshll.u32 %s258, 4
          %s267 = int_to_ptr.vmem [resolvable:$true] %s266
          %269 = dma.hbm_to_vmem [thread:$0]  %s265, 64, %s267, %s255
        $region40: #{tpu_custom_call.1} parent=35 // pred_fallthru
          _
      $region36: #{tpu_custom_call.1} parent=5 // pred_fallthru
        _
      %p270 = scmp.le.s32.totalorder 1, %s20
      %p271 = scmp.lt.s32.totalorder %s20, 3
      %p272 = pnand %p270, %p271
      %p273 = pneg %p272
      // Predicated region
      $region41: #{tpu_custom_call.1} parent=5 // pred_check
        _
      $region42: #{tpu_custom_call.1} parent=5 // pred_check_branch
        %275 = sbr.rel (%p272) target = $region44
      $region43: #{tpu_custom_call.1} parent=5 // pred_region
        %s276 = ssub.s32 %s20, 1
        %s277 = sand.u32 %s33, 1
        %s278 = scalar_lea.sflag [#allocation3], %s277
        %s279 = sand.u32 %s33, 1
        %s280 = smul.addr %s279, 4
        %s281 = scalar_lea.vmem [#allocation2], %s280
        // Predicated region
        $region45: #{tpu_custom_call.1} parent=43 // pred_check
          %p282 = pneg %p46
        $region46: #{tpu_custom_call.1} parent=43 // pred_check_branch
          %284 = sbr.rel (%p282) target = $region48
        $region47: #{tpu_custom_call.1} parent=43 // pred_region
          %286 = dma.done %s278, 64
        $region48: #{tpu_custom_call.1} parent=43 // pred_fallthru
          _
        // Predicated region
        $region49: #{tpu_custom_call.1} parent=43 // pred_check
          %p287 = pneg %p67
        $region50: #{tpu_custom_call.1} parent=43 // pred_check_branch
          %289 = sbr.rel (%p287) target = $region52
        $region51: #{tpu_custom_call.1} parent=43 // pred_region
          %291 = dma.done [#allocation6], 128
        $region52: #{tpu_custom_call.1} parent=43 // pred_fallthru
          _
        // Predicated region
        $region53: #{tpu_custom_call.1} parent=43 // pred_check
          %p292 = pneg %p88
        $region54: #{tpu_custom_call.1} parent=43 // pred_check_branch
          %294 = sbr.rel (%p292) target = $region56
        $region55: #{tpu_custom_call.1} parent=43 // pred_region
          %296 = dma.done [#allocation6], 768
        $region56: #{tpu_custom_call.1} parent=43 // pred_fallthru
          _
        // Predicated region
        $region57: #{tpu_custom_call.1} parent=43 // pred_check
          %p297 = pneg %p109
        $region58: #{tpu_custom_call.1} parent=43 // pred_check_branch
          %299 = sbr.rel (%p297) target = $region60
        $region59: #{tpu_custom_call.1} parent=43 // pred_region
          %301 = dma.done [#allocation9], 48
        $region60: #{tpu_custom_call.1} parent=43 // pred_fallthru
          _
        // Predicated region
        $region61: #{tpu_custom_call.1} parent=43 // pred_check
          %p302 = pneg %p130
        $region62: #{tpu_custom_call.1} parent=43 // pred_check_branch
          %304 = sbr.rel (%p302) target = $region64
        $region63: #{tpu_custom_call.1} parent=43 // pred_region
          %306 = dma.done [#allocation9], 1024
        $region64: #{tpu_custom_call.1} parent=43 // pred_fallthru
          _
        %s307 = sand.u32 %s33, 1
        %s308 = scalar_lea.sflag [#allocation3], %s307
        %s309 = sand.u32 %s33, 1
        %s310 = smul.addr %s309, 4
        %s311 = scalar_lea.vmem [#allocation2], %s310
        %p312 = pneg %p46
        %p313 = pneg %p43
        %p314 = pneg %p67
        %p315 = pneg %p64
        %p316 = pneg %p88
        %p317 = pneg %p85
        %p318 = pneg %p109
        %p319 = pneg %p106
        %p320 = pneg %p130
        %p321 = pneg %p127
        %p322 = pneg %p151
        %p323 = pneg %p148
        %p324 = pneg %p177
        %p325 = pneg %p174
        %s326 = sand.u32 %s164, 1
        %s327 = scalar_lea.sflag [#allocation4], %s326
        %s328 = sand.u32 %s164, 1
        %s329 = smul.addr %s328, 8
        %s330 = scalar_lea.vmem [#allocation11], %s329
        %v332 = vld [vmem:[%s281] sm:$0xf]
        %v333 = vld [vmem:[#allocation7] sm:$0xff]
        %v334 = vld [vmem:[#allocation7 + $0x8] sm:$0xf]
        %v335 = vld [vmem:[#allocation7 + $0xc] sm:$0xff]
        %v336 = vld [vmem:[#allocation7 + $0x14] sm:$0xf]
        %v337 = vld [vmem:[#allocation7 + $0x18] sm:$0xff]
        %v338 = vld [vmem:[#allocation7 + $0x20] sm:$0xf]
        %v339 = vld [vmem:[#allocation7 + $0x24] sm:$0xff]
        %v340 = vld [vmem:[#allocation7 + $0x2c] sm:$0xf]
        %v341 = vld [vmem:[#allocation8] sm:$0x7]
        %v343 = vperm.slane %v341, 0
        %v344 = vperm.slane %v341, 1
        %v345 = vperm.slane %v341, 2
        %v357 = vunpack.c.l.b16 %v333
        %v358 = vunpack.c.h.b16 %v333
        %v359 = vunpack.c.l.b16 %v334
        %v360 = vunpack.c.l.b16 %v335
        %v361 = vunpack.c.h.b16 %v335
        %v362 = vunpack.c.l.b16 %v336
        %v363 = vunpack.c.l.b16 %v337
        %v364 = vunpack.c.h.b16 %v337
        %v365 = vunpack.c.l.b16 %v338
        %v366 = vunpack.c.l.b16 %v339
        %v367 = vunpack.c.h.b16 %v339
        %v368 = vunpack.c.l.b16 %v340
        %v369 = vpack.c.b16 %v360, %v357
        %v370 = vpack.c.b16 %v361, %v358
        %v371 = vpack.c.b16 %v362, %v359
        %v372 = vpack.c.b16 %v366, %v363
        %v373 = vpack.c.b16 %v367, %v364
        %v374 = vpack.c.b16 %v368, %v365
        %vm381 = vcmask 261120
        %v383 = vsel %vm381, %v332, 0
        %385 = vmatpush.bf16.msra.mxu0 0
        %386 = vmatpush.bf16.msra.mxu0 0
        %387 = vmatpush.bf16.msra.mxu0 0
        %388 = vmatpush.bf16.msra.mxu0 0
        %389 = vmatpush.bf16.msra.mxu0 0
        %390 = vmatpush.bf16.msra.mxu0 0
        %391 = vmatpush.bf16.msra.mxu0 %v372
        %392 = vmatpush.bf16.msra.mxu0 %v369
        %393 = vmatmul.bf16.gmra.mxu0 %v383
        %v394 = vpop.f32.mrf.mxu0
        %v395 = vadd.f32 %v343, %v394
        %v396 = vpop.f32.mrf.mxu0
        %397 = vdwg.mxu0
        %398 = vmatpush.bf16.msra.mxu0 0
        %399 = vmatpush.bf16.msra.mxu0 0
        %400 = vmatpush.bf16.msra.mxu0 0
        %401 = vmatpush.bf16.msra.mxu0 0
        %402 = vmatpush.bf16.msra.mxu0 0
        %403 = vmatpush.bf16.msra.mxu0 0
        %404 = vmatpush.bf16.msra.mxu0 %v373
        %405 = vmatpush.bf16.msra.mxu0 %v370
        %406 = vmatmul.bf16.gmra.mxu0 %v383
        %v407 = vpop.f32.mrf.mxu0
        %v408 = vadd.f32 %v344, %v407
        %v409 = vpop.f32.mrf.mxu0
        %410 = vdwg.mxu0
        %411 = vmatpush.bf16.msra.mxu0 0
        %412 = vmatpush.bf16.msra.mxu0 0
        %413 = vmatpush.bf16.msra.mxu0 0
        %414 = vmatpush.bf16.msra.mxu0 0
        %415 = vmatpush.bf16.msra.mxu0 0
        %416 = vmatpush.bf16.msra.mxu0 0
        %417 = vmatpush.bf16.msra.mxu0 %v374
        %418 = vmatpush.bf16.msra.mxu0 %v371
        %419 = vmatmul.bf16.gmra.mxu0 %v383
        %v420 = vpop.f32.mrf.mxu0
        %v421 = vadd.f32 %v345, %v420
        %v422 = vpop.f32.mrf.mxu0
        %423 = vdwg.mxu0
        %v424 = vpack.c.bf16 %v408, %v395
        %v425 = vpack.c.bf16 %v421, %v421
        %427 = vrot.lane.b32.xlu0 %v424, 96
        %v428 = vpop.permute.xlu0 %427
        %429 = vrot.lane.b32.xlu0 %v424, 64
        %v430 = vpop.permute.xlu0 %429
        %431 = vrot.lane.b32.xlu0 %v424, 32
        %v432 = vpop.permute.xlu0 %431
        %v433 = vrot.slane %v424, 4
        %v434 = vrot.slane %v428, 4
        %v435 = vrot.slane %v430, 4
        %v436 = vrot.slane %v432, 4
        %438 = vrot.lane.b32.xlu0 %v425, 96
        %v439 = vpop.permute.xlu0 %438
        %440 = vrot.lane.b32.xlu0 %v425, 64
        %v441 = vpop.permute.xlu0 %440
        %442 = vrot.lane.b32.xlu0 %v425, 32
        %v443 = vpop.permute.xlu0 %442
        %v445 = vsel %vm381, %v424, 0
        %v448 = vsel %vm381, %v433, 0
        %450 = vmatpush.bf16.xpose.msra.mxu0 0
        %451 = vmatpush.bf16.xpose.msra.mxu0 0
        %452 = vmatpush.bf16.xpose.msra.mxu0 0
        %453 = vmatpush.bf16.xpose.msra.mxu0 0
        %454 = vmatpush.bf16.xpose.msra.mxu0 0
        %455 = vmatpush.bf16.xpose.msra.mxu0 0
        %456 = vmatpush.bf16.xpose.msra.mxu0 0
        %457 = vmatpush.bf16.xpose.msra.mxu0 %v448
        %458 = vmatmul.bf16.gmra.mxu0 %v445
        %v459 = vpop.f32.mrf.mxu0
        %v460 = vadd.f32 0.0, %v459
        %v461 = vpop.f32.mrf.mxu0
        %462 = vdwg.mxu0
        %v464 = vsel %vm381, %v428, 0
        %v467 = vsel %vm381, %v434, 0
        %469 = vmatpush.bf16.xpose.msra.mxu0 0
        %470 = vmatpush.bf16.xpose.msra.mxu0 0
        %471 = vmatpush.bf16.xpose.msra.mxu0 0
        %472 = vmatpush.bf16.xpose.msra.mxu0 0
        %473 = vmatpush.bf16.xpose.msra.mxu0 0
        %474 = vmatpush.bf16.xpose.msra.mxu0 0
        %475 = vmatpush.bf16.xpose.msra.mxu0 0
        %476 = vmatpush.bf16.xpose.msra.mxu0 %v467
        %477 = vmatmul.bf16.gmra.mxu0 %v464
        %v478 = vpop.f32.mrf.mxu0
        %v479 = vadd.f32 0.0, %v478
        %v480 = vpop.f32.mrf.mxu0
        %481 = vdwg.mxu0
        %v483 = vsel %vm381, %v430, 0
        %v486 = vsel %vm381, %v435, 0
        %488 = vmatpush.bf16.xpose.msra.mxu0 0
        %489 = vmatpush.bf16.xpose.msra.mxu0 0
        %490 = vmatpush.bf16.xpose.msra.mxu0 0
        %491 = vmatpush.bf16.xpose.msra.mxu0 0
        %492 = vmatpush.bf16.xpose.msra.mxu0 0
        %493 = vmatpush.bf16.xpose.msra.mxu0 0
        %494 = vmatpush.bf16.xpose.msra.mxu0 0
        %495 = vmatpush.bf16.xpose.msra.mxu0 %v486
        %496 = vmatmul.bf16.gmra.mxu0 %v483
        %v497 = vpop.f32.mrf.mxu0
        %v498 = vadd.f32 0.0, %v497
        %v499 = vpop.f32.mrf.mxu0
        %500 = vdwg.mxu0
        %v502 = vsel %vm381, %v432, 0
        %v505 = vsel %vm381, %v436, 0
        %507 = vmatpush.bf16.xpose.msra.mxu0 0
        %508 = vmatpush.bf16.xpose.msra.mxu0 0
        %509 = vmatpush.bf16.xpose.msra.mxu0 0
        %510 = vmatpush.bf16.xpose.msra.mxu0 0
        %511 = vmatpush.bf16.xpose.msra.mxu0 0
        %512 = vmatpush.bf16.xpose.msra.mxu0 0
        %513 = vmatpush.bf16.xpose.msra.mxu0 0
        %514 = vmatpush.bf16.xpose.msra.mxu0 %v505
        %515 = vmatmul.bf16.gmra.mxu0 %v502
        %v516 = vpop.f32.mrf.mxu0
        %v517 = vadd.f32 0.0, %v516
        %v518 = vpop.f32.mrf.mxu0
        %519 = vdwg.mxu0
        %v520 = vmul.f32 %v460, 0.17677669
        %v521 = vmul.f32 %v479, 0.17677669
        %v522 = vmul.f32 %v498, 0.17677669
        %v523 = vmul.f32 %v517, 0.17677669
        %v524 = vld [vmem:[#allocation5] sm:$0xff]
        %vm525 = vcmp.gt.f32.partialorder %v524, 0.0
        %vm526 = vcmp.eq.f32.partialorder %v520, 0.0
        %vm527 = vcmp.eq.f32.partialorder %v521, 0.0
        %vm528 = vcmp.eq.f32.partialorder %v522, 0.0
        %vm529 = vcmp.eq.f32.partialorder %v523, 0.0
        %v530 = vsel %vm525, 1, 0
        %vm531 = vcmp.eq.s32.totalorder %v530, 1
        %vm532 = vmor %vm531, %vm526
        %vm533 = vmor %vm531, %vm527
        %vm534 = vmor %vm531, %vm528
        %vm535 = vmor %vm531, %vm529
        %v536 = vsel %vm532, -1e+09, %v520
        %v537 = vsel %vm533, -1e+09, %v521
        %v538 = vsel %vm534, -1e+09, %v522
        %v539 = vsel %vm535, -1e+09, %v523
        %vm540 = vcmask 64512
        %v541 = vsel %vm540, %v536, -inf
        %542 = vmax.xlane.f32.xlu0 %v541
        %v543 = vpop.xlane.xlu0 %542
        %v544 = vsel %vm540, %v537, -inf
        %545 = vmax.xlane.f32.xlu0 %v544
        %v546 = vpop.xlane.xlu0 %545
        %v547 = vsel %vm540, %v538, -inf
        %548 = vmax.xlane.f32.xlu0 %v547
        %v549 = vpop.xlane.xlu0 %548
        %v550 = vsel %vm540, %v539, -inf
        %551 = vmax.xlane.f32.xlu0 %v550
        %v552 = vpop.xlane.xlu0 %551
        %v553 = vsub.f32 %v536, %v543
        %v554 = vsub.f32 %v537, %v546
        %v555 = vsub.f32 %v538, %v549
        %v556 = vsub.f32 %v539, %v552
        %v557 = vmul.f32 %v553, 1.442695
        %v558 = vpow.pop %v557
        %v559 = vmul.f32 %v554, 1.442695
        %v560 = vpow.pop %v559
        %v561 = vmul.f32 %v555, 1.442695
        %v562 = vpow.pop %v561
        %v563 = vmul.f32 %v556, 1.442695
        %v564 = vpow.pop %v563
        %v565 = vsel %vm540, %v558, 0.0
        %566 = vadd.xlane.f32.xlu0 %v565
        %v567 = vpop.xlane.xlu0 %566
        %v568 = vsel %vm540, %v560, 0.0
        %569 = vadd.xlane.f32.xlu0 %v568
        %v570 = vpop.xlane.xlu0 %569
        %v571 = vsel %vm540, %v562, 0.0
        %572 = vadd.xlane.f32.xlu0 %v571
        %v573 = vpop.xlane.xlu0 %572
        %v574 = vsel %vm540, %v564, 0.0
        %575 = vadd.xlane.f32.xlu0 %v574
        %v576 = vpop.xlane.xlu0 %575
        %v577 = vrcp.pop %v567
        %v578 = vrcp.pop %v570
        %v579 = vrcp.pop %v573
        %v580 = vrcp.pop %v576
        %v581 = vmul.f32 %v558, %v577
        %v582 = vmul.f32 %v560, %v578
        %v583 = vmul.f32 %v562, %v579
        %v584 = vmul.f32 %v564, %v580
        %v585 = vpack.c.bf16 %v581, %v581
        %v586 = vpack.c.bf16 %v582, %v582
        %v587 = vpack.c.bf16 %v583, %v583
        %v588 = vpack.c.bf16 %v584, %v584
        %v590 = vsel %vm540, %v585, 0
        %vm592 = vcmask 1043456
        %v594 = vsel %vm592, %v425, 0
        %596 = vmatpush.bf16.msra.mxu0 0
        %597 = vmatpush.bf16.msra.mxu0 0
        %598 = vmatpush.bf16.msra.mxu0 0
        %599 = vmatpush.bf16.msra.mxu0 0
        %600 = vmatpush.bf16.msra.mxu0 0
        %601 = vmatpush.bf16.msra.mxu0 0
        %602 = vmatpush.bf16.msra.mxu0 0
        %603 = vmatpush.bf16.msra.mxu0 %v594
        %604 = vmatmul.bf16.gmra.mxu0 %v590
        %v605 = vpop.f32.mrf.mxu0
        %v606 = vadd.f32 0.0, %v605
        %v607 = vpop.f32.mrf.mxu0
        %608 = vdwg.mxu0
        %v610 = vsel %vm540, %v586, 0
        %v613 = vsel %vm592, %v439, 0
        %615 = vmatpush.bf16.msra.mxu0 0
        %616 = vmatpush.bf16.msra.mxu0 0
        %617 = vmatpush.bf16.msra.mxu0 0
        %618 = vmatpush.bf16.msra.mxu0 0
        %619 = vmatpush.bf16.msra.mxu0 0
        %620 = vmatpush.bf16.msra.mxu0 0
        %621 = vmatpush.bf16.msra.mxu0 0
        %622 = vmatpush.bf16.msra.mxu0 %v613
        %623 = vmatmul.bf16.gmra.mxu0 %v610
        %v624 = vpop.f32.mrf.mxu0
        %v625 = vadd.f32 0.0, %v624
        %v626 = vpop.f32.mrf.mxu0
        %627 = vdwg.mxu0
        %v629 = vsel %vm540, %v587, 0
        %v632 = vsel %vm592, %v441, 0
        %634 = vmatpush.bf16.msra.mxu0 0
        %635 = vmatpush.bf16.msra.mxu0 0
        %636 = vmatpush.bf16.msra.mxu0 0
        %637 = vmatpush.bf16.msra.mxu0 0
        %638 = vmatpush.bf16.msra.mxu0 0
        %639 = vmatpush.bf16.msra.mxu0 0
        %640 = vmatpush.bf16.msra.mxu0 0
        %641 = vmatpush.bf16.msra.mxu0 %v632
        %642 = vmatmul.bf16.gmra.mxu0 %v629
        %v643 = vpop.f32.mrf.mxu0
        %v644 = vadd.f32 0.0, %v643
        %v645 = vpop.f32.mrf.mxu0
        %646 = vdwg.mxu0
        %v648 = vsel %vm540, %v588, 0
        %v651 = vsel %vm592, %v443, 0
        %653 = vmatpush.bf16.msra.mxu0 0
        %654 = vmatpush.bf16.msra.mxu0 0
        %655 = vmatpush.bf16.msra.mxu0 0
        %656 = vmatpush.bf16.msra.mxu0 0
        %657 = vmatpush.bf16.msra.mxu0 0
        %658 = vmatpush.bf16.msra.mxu0 0
        %659 = vmatpush.bf16.msra.mxu0 0
        %660 = vmatpush.bf16.msra.mxu0 %v651
        %661 = vmatmul.bf16.gmra.mxu0 %v648
        %v662 = vpop.f32.mrf.mxu0
        %v663 = vadd.f32 0.0, %v662
        %v664 = vpop.f32.mrf.mxu0
        %665 = vdwg.mxu0
        %v666 = vpack.c.bf16 %v606, %v606
        %v667 = vpack.c.bf16 %v625, %v625
        %v668 = vpack.c.bf16 %v644, %v644
        %v669 = vpack.c.bf16 %v663, %v663
        %v670 = vld [vmem:[#allocation10] sm:$0xf]
        %v671 = vld [vmem:[#allocation10 + $0x4] sm:$0xf]
        %v672 = vld [vmem:[#allocation10 + $0x8] sm:$0xf]
        %v673 = vld [vmem:[#allocation10 + $0xc] sm:$0xf]
        %v674 = vld [vmem:[#allocation10 + $0x10] sm:$0xf]
        %v675 = vld [vmem:[#allocation10 + $0x14] sm:$0xf]
        %v676 = vld [vmem:[#allocation10 + $0x18] sm:$0xf]
        %v677 = vld [vmem:[#allocation10 + $0x1c] sm:$0xf]
        %v678 = vld [vmem:[#allocation10 + $0x20] sm:$0xf]
        %v679 = vld [vmem:[#allocation10 + $0x24] sm:$0xf]
        %v680 = vld [vmem:[#allocation10 + $0x28] sm:$0xf]
        %v681 = vld [vmem:[#allocation10 + $0x2c] sm:$0xf]
        %v682 = vld [vmem:[#allocation10 + $0x30] sm:$0xf]
        %v683 = vld [vmem:[#allocation10 + $0x34] sm:$0xf]
        %v684 = vld [vmem:[#allocation10 + $0x38] sm:$0xf]
        %v685 = vld [vmem:[#allocation10 + $0x3c] sm:$0xf]
        %v690 = vunpack.c.l.b16 %v670
        %v691 = vunpack.c.l.b16 %v671
        %v692 = vunpack.c.l.b16 %v672
        %v693 = vunpack.c.l.b16 %v673
        %v694 = vpack.c.b16 %v691, %v690
        %v695 = vpack.c.b16 %v693, %v692
        %v699 = vsel %vm381, %v666, 0
        %701 = vmatpush.bf16.msra.mxu0 0
        %702 = vmatpush.bf16.msra.mxu0 0
        %703 = vmatpush.bf16.msra.mxu0 0
        %704 = vmatpush.bf16.msra.mxu0 0
        %705 = vmatpush.bf16.msra.mxu0 0
        %706 = vmatpush.bf16.msra.mxu0 0
        %707 = vmatpush.bf16.msra.mxu0 %v695
        %708 = vmatpush.bf16.msra.mxu0 %v694
        %709 = vmatmul.bf16.gmra.mxu0 %v699
        %v710 = vpop.f32.mrf.mxu0
        %v711 = vadd.f32 0.0, %v710
        %v712 = vpop.f32.mrf.mxu0
        %713 = vdwg.mxu0
        %v718 = vunpack.c.l.b16 %v674
        %v719 = vunpack.c.l.b16 %v675
        %v720 = vunpack.c.l.b16 %v676
        %v721 = vunpack.c.l.b16 %v677
        %v722 = vpack.c.b16 %v719, %v718
        %v723 = vpack.c.b16 %v721, %v720
        %v727 = vsel %vm381, %v667, 0
        %729 = vmatpush.bf16.msra.mxu0 0
        %730 = vmatpush.bf16.msra.mxu0 0
        %731 = vmatpush.bf16.msra.mxu0 0
        %732 = vmatpush.bf16.msra.mxu0 0
        %733 = vmatpush.bf16.msra.mxu0 0
        %734 = vmatpush.bf16.msra.mxu0 0
        %735 = vmatpush.bf16.msra.mxu0 %v723
        %736 = vmatpush.bf16.msra.mxu0 %v722
        %737 = vmatmul.bf16.gmra.mxu0 %v727
        %v738 = vpop.f32.mrf.mxu0
        %v739 = vadd.f32 0.0, %v738
        %v740 = vpop.f32.mrf.mxu0
        %741 = vdwg.mxu0
        %v746 = vunpack.c.l.b16 %v678
        %v747 = vunpack.c.l.b16 %v679
        %v748 = vunpack.c.l.b16 %v680
        %v749 = vunpack.c.l.b16 %v681
        %v750 = vpack.c.b16 %v747, %v746
        %v751 = vpack.c.b16 %v749, %v748
        %v755 = vsel %vm381, %v668, 0
        %757 = vmatpush.bf16.msra.mxu0 0
        %758 = vmatpush.bf16.msra.mxu0 0
        %759 = vmatpush.bf16.msra.mxu0 0
        %760 = vmatpush.bf16.msra.mxu0 0
        %761 = vmatpush.bf16.msra.mxu0 0
        %762 = vmatpush.bf16.msra.mxu0 0
        %763 = vmatpush.bf16.msra.mxu0 %v751
        %764 = vmatpush.bf16.msra.mxu0 %v750
        %765 = vmatmul.bf16.gmra.mxu0 %v755
        %v766 = vpop.f32.mrf.mxu0
        %v767 = vadd.f32 0.0, %v766
        %v768 = vpop.f32.mrf.mxu0
        %769 = vdwg.mxu0
        %v774 = vunpack.c.l.b16 %v682
        %v775 = vunpack.c.l.b16 %v683
        %v776 = vunpack.c.l.b16 %v684
        %v777 = vunpack.c.l.b16 %v685
        %v778 = vpack.c.b16 %v775, %v774
        %v779 = vpack.c.b16 %v777, %v776
        %v783 = vsel %vm381, %v669, 0
        %785 = vmatpush.bf16.msra.mxu0 0
        %786 = vmatpush.bf16.msra.mxu0 0
        %787 = vmatpush.bf16.msra.mxu0 0
        %788 = vmatpush.bf16.msra.mxu0 0
        %789 = vmatpush.bf16.msra.mxu0 0
        %790 = vmatpush.bf16.msra.mxu0 0
        %791 = vmatpush.bf16.msra.mxu0 %v779
        %792 = vmatpush.bf16.msra.mxu0 %v778
        %793 = vmatmul.bf16.gmra.mxu0 %v783
        %v794 = vpop.f32.mrf.mxu0
        %v795 = vadd.f32 0.0, %v794
        %v796 = vpop.f32.mrf.mxu0
        %797 = vdwg.mxu0
        %v798 = vsel %vm381, %v711, 0.0
        %v799 = vsel %vm381, %v739, 0.0
        %v800 = vadd.f32 %v798, %v799
        %v801 = vsel %vm381, %v767, 0.0
        %v802 = vadd.f32 %v800, %v801
        %v803 = vsel %vm381, %v795, 0.0
        %v804 = vadd.f32 %v802, %v803
        %v805 = vld [vmem:[%s5] sm:$0x1]
        %v807 = vperm.slane %v805, 0
        %v809 = vadd.f32 %v804, %v807
        %v810 = vmul.f32 %v809, 0.5
        %v811 = vmul.f32 %v809, 0.70710677
        %v812 = vmul.f32 %v811, %v811
        %v813 = vmin.f32 16.0, %v812
        %v814 = vmul.f32 %v813, 2.1237322e-06
        %v815 = vadd.f32 %v814, 0.00028619796
        %v816 = vmul.f32 %v813, %v815
        %v817 = vadd.f32 %v816, 0.0036580483
        %v818 = vmul.f32 %v813, %v817
        %v819 = vadd.f32 %v818, 0.05243302
        %v820 = vmul.f32 %v813, %v819
        %v821 = vadd.f32 %v820, 0.18741608
        %v822 = vmul.f32 %v813, %v821
        %v823 = vadd.f32 %v822, 1.1283791
        %v824 = vmul.f32 %v811, %v823
        %v825 = vmul.f32 %v813, 3.8918573e-05
        %v826 = vadd.f32 %v825, 0.001143296
        %v827 = vmul.f32 %v813, %v826
        %v828 = vadd.f32 %v827, 0.014752088
        %v829 = vmul.f32 %v813, %v828
        %v830 = vadd.f32 %v829, 0.112945676
        %v831 = vmul.f32 %v813, %v830
        %v832 = vadd.f32 %v831, 0.4994258
        %v833 = vmul.f32 %v813, %v832
        %v834 = vadd.f32 %v833, 1.0
        %v835 = vrcp.pop %v834
        %v836 = vmul.f32 %v834, %v835
        %v837 = vsub.f32 1.0, %v836
        %v838 = vmul.f32 %v835, %v837
        %v839 = vadd.f32 %v835, %v838
        %vm840 = vweird.f32 %v834
        %vm841 = vweird.f32 %v835
        %vm842 = vmor %vm840, %vm841
        %v843 = vsel %vm842, %v835, %v839
        %v844 = vand.u32 2147483647, %v834
        %vm845 = vcmp.eq.f32.partialorder %v844, 8.507059e+37
        %v846 = vand.u32 %v834, 2147483648
        %v847 = vor.u32 1.1754944e-38, %v846
        %v848 = vsel %vm845, %v847, %v843
        %v849 = vmul.f32 %v824, %v848
        %v850 = vmin.f32 %v849, 1.0
        %v851 = vmax.f32 %v850, -1.0
        %v852 = vadd.f32 %v851, 1.0
        %v853 = vmul.f32 %v810, %v852
        %854 = vst.msk [vmem:[%s330] sm:$0xff] %vm381, %v853
        %s855 = sand.u32 %s164, 1
        %s856 = scalar_lea.sflag [#allocation4], %s855
        %s857 = sand.u32 %s164, 1
        %s858 = smul.addr %s857, 8
        %s859 = scalar_lea.vmem [#allocation11], %s858
        // Predicated region
        $region65: #{tpu_custom_call.1} parent=43 // pred_check
          %p860 = pneg %p174
        $region66: #{tpu_custom_call.1} parent=43 // pred_check_branch
          %862 = sbr.rel (%p860) target = $region68
        $region67: #{tpu_custom_call.1} parent=43 // pred_region
          %864 = vsyncadd %s856, 0
          %s865 = smul.addr %s25, 8
          %s866 = scalar_lea.hbm %s6, %s865
          %s868 = sshll.u32 %s859, 4
          %s869 = int_to_ptr.vmem [resolvable:$true] %s868
          %s870 = sshll.u32 %s866, 4
          %s871 = int_to_ptr.hbm [resolvable:$true] %s870
          %873 = dma.vmem_to_hbm [thread:$0]  %s869, 128, %s871, %s856
        $region68: #{tpu_custom_call.1} parent=43 // pred_fallthru
          _
      $region44: #{tpu_custom_call.1} parent=5 // pred_fallthru
        _
      %p874 = scmp.le.s32.totalorder 2, %s20
      // Predicated region
      $region69: #{tpu_custom_call.1} parent=5 // pred_check
        %p875 = pneg %p874
      $region70: #{tpu_custom_call.1} parent=5 // pred_check_branch
        %877 = sbr.rel (%p875) target = $region72
      $region71: #{tpu_custom_call.1} parent=5 // pred_region
        %s878 = ssub.s32 %s20, 2
        // Predicated region
        $region73: #{tpu_custom_call.1} parent=71 // pred_check
          %p879 = pneg %p180
        $region74: #{tpu_custom_call.1} parent=71 // pred_check_branch
          %881 = sbr.rel (%p879) target = $region76
        $region75: #{tpu_custom_call.1} parent=71 // pred_region
          %s882 = sand.u32 %s165, 1
          %s883 = scalar_lea.sflag [#allocation4], %s882
          %s884 = sand.u32 %s165, 1
          %s885 = smul.addr %s884, 8
          %s886 = scalar_lea.vmem [#allocation11], %s885
          %888 = dma.done %s883, 128
        $region76: #{tpu_custom_call.1} parent=71 // pred_fallthru
          _
      $region72: #{tpu_custom_call.1} parent=5 // pred_fallthru
        _
    $region6: #{tpu_custom_call.1} parent=1 // loop_footer
      %s24 = sadd.s32 1, %s20
    $region7: #{tpu_custom_call.1} parent=1 // loop_footer_branch
      %19 = sbr.rel target = $region3
    $region8: #{tpu_custom_call.1} parent=1 // loop_exit
      _
    %889 = vsyncpa [#allocation3], 1
    %s890 = scalar_lea.sflag [#allocation3], 1
    %891 = vsyncpa %s890, 1
    %892 = vsyncpa [#allocation6], 1
    %893 = vsyncpa [#allocation9], 1
    %894 = vsyncpa [#allocation4], 1
    %s895 = scalar_lea.sflag [#allocation4], 1
    %896 = vsyncpa %s895, 1

</llo_original>
